<compile_context>
chip_gen: v6e
topology: v6e:2x2x1
jax: 0.10.0
libtpu: 0.0.40
codegen_flags: <defaults>
</compile_context>

<pallas_src>
import numpy as np

import jax
import jax.numpy as jnp
from jax.experimental import pallas as pl
from jax.experimental.pallas import tpu as pltpu


def _round_up(a, m):
    return ((a + m - 1) // m) * m


def _build_count_matrix(L, kernel_size, stride, pad, L_out):
    """Banded matrix of window multiplicities, shape (L, L_out), bf16.

    cnt[j, t] = #{k in [0, K) : clip(t*stride + k - pad, 0, L-1) == j}
    so that AvgPool1d(edge-replicated x)[:, t] = (1/K) * sum_j x[:, j]*cnt[j, t],
    exactly matching the PyTorch module. Entries are integers <= kernel_size,
    which are exact in bf16 for kernel_size <= 256 (DLinear uses ~25).
    """
    t = np.arange(L_out)[:, None]                    # (L_out, 1)
    k = np.arange(kernel_size)[None, :]              # (1, K)
    src = np.clip(t * stride + k - pad, 0, L - 1)    # (L_out, K)
    cnt = np.zeros((L_out, L), dtype=np.float32)
    rows = np.repeat(np.arange(L_out), kernel_size)
    np.add.at(cnt, (rows, src.ravel()), 1.0)
    return jnp.asarray(cnt.T).astype(jnp.bfloat16)   # (L, L_out)


def _make_kernel(inv_k, with_residual):
    def kernel(x_ref, cnt_ref, o_ref, *res_ref):
        # x_ref: (TR, L) f32   cnt_ref: (L, L_out) bf16   o_ref: (TR, L_out)
        x = x_ref[...].astype(jnp.float32)
        # Split-precision matmul: counts are exact in bf16, so only x needs a
        # hi/lo split. Two native bf16 MXU passes + f32 accumulate give near-
        # f32 accuracy without Precision.HIGHEST.
        x_hi = x.astype(jnp.bfloat16)
        x_lo = (x - x_hi.astype(jnp.float32)).astype(jnp.bfloat16)
        cnt = cnt_ref[...]
        acc = jnp.dot(x_hi, cnt, preferred_element_type=jnp.float32)
        acc = acc + jnp.dot(x_lo, cnt, preferred_element_type=jnp.float32)
        mean = acc * jnp.float32(inv_k)               # 1/K epilogue on the VPU
        o_ref[...] = mean.astype(o_ref.dtype)
        if with_residual:
            # Free VPU epilogue: the x tile is already resident in VMEM.
            res_ref[0][...] = (x - mean).astype(res_ref[0].dtype)

    return kernel


def _pick_row_tile(R, L, L_out, n_outputs):
    """Row tile (multiple of 8) targeting ~4 MiB of f32 x per grid step."""
    if R <= 8:
        return 8
    # Big tiles amortize the ~0.35us per-step overhead and MXU weight reloads.
    cap = max(8, (4 * 1024 * 1024) // (4 * L))
    # Floor of 2 grid steps so ("parallel",) can shard across v7x's two
    # TensorCores; costs only ~0.35us on single-TC v5e / v6e.
    tr = _round_up(max(min(cap, (R + 1) // 2), 8), 8)
    # VMEM budget guard (v7x: 64 MiB physical, 32 MiB default scoped):
    # double-buffered x + outputs + resident bf16 count matrix < 24 MiB.
    w_out = max(L, L_out)

    def vmem_bytes(t):
        return (2 * t * L * 4
                + n_outputs * 2 * t * w_out * 4
                + 2 * L * L_out * 2)

    while tr > 8 and vmem_bytes(tr) > 24 * 1024 * 1024:
        tr -= 8
    return tr


def moving_avg(x, kernel_size, stride, return_residual=False):
    """Pallas implementation of DLinear's moving_avg.

    x: [B, L, C] float array -> [B, L_out, C] with
    L_out = (L + 2*pad - kernel_size)//stride + 1, pad = (kernel_size-1)//2,
    matching the PyTorch module (front/end edge replication + AvgPool1d).

    If return_residual=True (requires stride == 1 and L_out == L, i.e. odd
    kernel_size), also returns x - moving_mean fused in the same kernel.
    """
    B, L, C = x.shape
    pad = (kernel_size - 1) // 2
    L_out = (L + 2 * pad - kernel_size) // stride + 1
    assert L_out >= 1, "kernel_size too large for this sequence length"
    if return_residual:
        assert stride == 1 and L_out == L, (
            "residual fusion requires stride=1 and odd kernel_size")

    # Lane-dense layout: rows = B*C, time on the 128-lane axis.
    # TODO(synk): at the DLinear model level, keep activations in this (B*C, L)
    # layout across series_decomp + the per-channel Linear and transpose only
    # at model boundaries; these two transposes are HBM passes comparable in
    # cost to the (mem-bound) kernel itself.
    R = B * C
    xt = jnp.transpose(x, (0, 2, 1)).reshape(R, L)

    cnt = _build_count_matrix(L, kernel_size, stride, pad, L_out)

    n_outputs = 2 if return_residual else 1
    TR = _pick_row_tile(R, L, L_out, n_outputs)
    grid = ((R + TR - 1) // TR,)   # partial last block handled by Pallas

    kernel = _make_kernel(1.0 / float(kernel_size), return_residual)

    mean_shape = jax.ShapeDtypeStruct((R, L_out), x.dtype)
    mean_spec = pl.BlockSpec((TR, L_out), lambda r: (r, 0))
    if return_residual:
        out_shape = (mean_shape, jax.ShapeDtypeStruct((R, L), x.dtype))
        out_specs = (mean_spec, pl.BlockSpec((TR, L), lambda r: (r, 0)))
    else:
        out_shape = mean_shape
        out_specs = mean_spec

    result = pl.pallas_call(
        kernel,
        out_shape=out_shape,
        grid_spec=pltpu.PrefetchScalarGridSpec(
            num_scalar_prefetch=0,
            grid=grid,
            in_specs=[
                pl.BlockSpec((TR, L), lambda r: (r, 0)),
                # Constant index_map -> count matrix stays VMEM-resident.
                pl.BlockSpec((L, L_out), lambda r: (0, 0)),
            ],
            out_specs=out_specs,
        ),
        compiler_params=pltpu.CompilerParams(
            dimension_semantics=("parallel",),
        ),
    )(xt, cnt)

    if return_residual:
        mean_rows, res_rows = result
        mean = jnp.transpose(mean_rows.reshape(B, C, L_out), (0, 2, 1))
        res = jnp.transpose(res_rows.reshape(B, C, L), (0, 2, 1))
        return mean, res
    return jnp.transpose(result.reshape(B, C, L_out), (0, 2, 1))


def moving_avg_ref(x, kernel_size, stride):
    """Pure-JAX reference mirroring the PyTorch module, for validation."""
    pad = (kernel_size - 1) // 2
    front = jnp.repeat(x[:, 0:1, :], pad, axis=1)
    end = jnp.repeat(x[:, -1:, :], pad, axis=1)
    xp = jnp.concatenate([front, x, end], axis=1)
    L_pad = xp.shape[1]
    L_out = (L_pad - kernel_size) // stride + 1
    windows = jnp.stack(
        [xp[:, t * stride: t * stride + kernel_size, :] for t in range(L_out)],
        axis=1,
    )  # [B, L_out, K, C]
    return windows.mean(axis=2)


if __name__ == "__main__":
    # Small shapes consistent with the module: [batch, seq_len, channels].
    key = jax.random.PRNGKey(0)
    B, L, C = 2, 16, 4
    x = jax.random.normal(key, (B, L, C), dtype=jnp.float32)

    # Typical DLinear config (odd kernel, stride 1) plus an even-K / strided
    # config to exercise the general path.
    for kernel_size, stride in [(5, 1), (4, 2)]:
        out = jax.block_until_ready(moving_avg(x, kernel_size, stride))
        ref = moving_avg_ref(x, kernel_size, stride)
        assert out.shape == ref.shape, (kernel_size, stride, out.shape, ref.shape)
        assert jnp.allclose(out, ref, atol=1e-4, rtol=1e-4), (
            "mismatch vs reference", kernel_size, stride)

    # Fused trend + residual (series_decomp) path.
    mean, res = moving_avg(x, 5, 1, return_residual=True)
    jax.block_until_ready((mean, res))
    ref_mean = moving_avg_ref(x, 5, 1)
    assert jnp.allclose(mean, ref_mean, atol=1e-4, rtol=1e-4)
    assert jnp.allclose(res, x - ref_mean, atol=1e-4, rtol=1e-4)

    # Partial last row-block path (R = B*C not a multiple of the row tile).
    x2 = jax.random.normal(jax.random.PRNGKey(1), (3, 24, 7), dtype=jnp.float32)
    out2 = jax.block_until_ready(moving_avg(x2, 7, 1))
    ref2 = moving_avg_ref(x2, 7, 1)
    assert out2.shape == ref2.shape
    assert jnp.allclose(out2, ref2, atol=1e-4, rtol=1e-4)

    print("KERNEL_OK")
</pallas_src>

<mosaic_0001>
module attributes {stable_mosaic.version = 11 : i64} {
  func.func @kernel(%arg0: i32, %arg1: memref<8x16xf32, #tpu.memory_space<vmem>>, %arg2: memref<16x16xbf16, #tpu.memory_space<vmem>>, %arg3: memref<8x16xf32, #tpu.memory_space<vmem>>) attributes {dimension_semantics = [#tpu.dimension_semantics<parallel>], iteration_bounds = array<i64: 1>, scalar_prefetch = 0 : i64, scratch_operands = 0 : i64, tpu.core_type = #tpu.core_type<tc>, window_params = [{transform_indices = @transform_0, window_bounds = array<i64: 8, 16>}, {pipeline_mode = #tpu.pipeline_mode<synchronous>, transform_indices = @transform_1, window_bounds = array<i64: 16, 16>}, {transform_indices = @transform_2, window_bounds = array<i64: 8, 16>}]} {
    %c0 = arith.constant 0 : index
    %c0_0 = arith.constant 0 : index
    %0 = vector.load %arg1[%c0, %c0_0] : memref<8x16xf32, #tpu.memory_space<vmem>>, vector<8x16xf32>
    %1 = arith.truncf %0 : vector<8x16xf32> to vector<8x16xbf16>
    %2 = arith.extf %1 : vector<8x16xbf16> to vector<8x16xf32>
    %3 = arith.subf %0, %2 : vector<8x16xf32>
    %4 = arith.truncf %3 : vector<8x16xf32> to vector<8x16xbf16>
    %c0_1 = arith.constant 0 : index
    %c0_2 = arith.constant 0 : index
    %5 = vector.load %arg2[%c0_1, %c0_2] : memref<16x16xbf16, #tpu.memory_space<vmem>>, vector<16x16xbf16>
    %cst = arith.constant dense<0.000000e+00> : vector<8x16xf32>
    %6 = tpu.matmul %1, %5, %cst {dimension_numbers = #tpu.dot_dimension_numbers<[1], [0], [0], [1], [0, 0, 1, 1], [], []>} : vector<8x16xbf16>, vector<16x16xbf16>, vector<8x16xf32> -> vector<8x16xf32>
    %cst_3 = arith.constant dense<0.000000e+00> : vector<8x16xf32>
    %7 = tpu.matmul %4, %5, %cst_3 {dimension_numbers = #tpu.dot_dimension_numbers<[1], [0], [0], [1], [0, 0, 1, 1], [], []>} : vector<8x16xbf16>, vector<16x16xbf16>, vector<8x16xf32> -> vector<8x16xf32>
    %8 = arith.addf %6, %7 : vector<8x16xf32>
    %cst_4 = arith.constant 2.000000e-01 : f32
    %9 = vector.broadcast %cst_4 : f32 to vector<8x16xf32>
    %10 = arith.mulf %8, %9 : vector<8x16xf32>
    %c0_5 = arith.constant 0 : index
    %c0_6 = arith.constant 0 : index
    %11 = vector.load %arg3[%c0_5, %c0_6] : memref<8x16xf32, #tpu.memory_space<vmem>>, vector<8x16xf32>
    tpu.vector_store %arg3[%c0_5, %c0_6], %10 {strides = array<i32>} : memref<8x16xf32, #tpu.memory_space<vmem>>, vector<8x16xf32>,
    return
  }
  func.func @transform_0(%arg0: i32) -> (i32, i32) {
    %c0_i32 = arith.constant 0 : i32
    %c0_i32_0 = arith.constant 0 : i32
    return %arg0, %c0_i32 : i32, i32
  }
  func.func @transform_1(%arg0: i32) -> (i32, i32) {
    %c0_i32 = arith.constant 0 : i32
    %c0_i32_0 = arith.constant 0 : i32
    %c0_i32_1 = arith.constant 0 : i32
    return %c0_i32, %c0_i32_0 : i32, i32
  }
  func.func @transform_2(%arg0: i32) -> (i32, i32) {
    %c0_i32 = arith.constant 0 : i32
    %c0_i32_0 = arith.constant 0 : i32
    return %arg0, %c0_i32 : i32, i32
  }
}

</mosaic_0001>

<llo_original>
// kernel: tpu_custom_call.1
$region0: #{tpu_custom_call.1}
  #allocation0 [shape = 'u32[]', space=smem, size = 0x4, offset = 0x4, fixed_abs, tag = 'smem constant byte address 0x4 - core index']
  #allocation1 [shape = 'u32[144,128]{1,0:T(1,128)}', space=vmem, size = 0x12000, scoped, tag = 'internal scratch']
  %s0 = inlined_call_operand.hbm [shape: f32[8,16], index: 0, kind: input, shape index: {}]
  %s1 = inlined_call_operand.hbm [shape: bf16[16,16], index: 1, kind: input, shape index: {}]
  %s2 = inlined_call_operand.hbm [shape: f32[8,16], index: 2, kind: output, shape index: {}]
  %s3 = sld [smem:[#allocation0]]
  $region26: #{tpu_custom_call.1} parent=0
    _
  %s5 = ssub.s32 1, %s3
  %s6 = scalar_select 0, %s5, %s3
  $region1: #{tpu_custom_call.1} parent=0
    #allocation2 [shape = 'u8[4096]{0}', space=vmem, size = 0x1000, scoped, tag = 'input window, operand 0, single buffered']
    #allocation3 [shape = 's32[1]{0}', space=sflag, size = 0x4, scoped, tag = 'scoped memory for tpu_custom_call.1']
    #allocation4 [shape = 's32[1]{0}', space=sflag, size = 0x4, scoped, tag = 'scoped memory for tpu_custom_call.1']
    #allocation5 [shape = 'u8[4096]{0}', space=vmem, size = 0x1000, scoped, tag = 'input window, operand 1, single buffered']
    #allocation6 [shape = 's32[1]{0}', space=sflag, size = 0x4, scoped, tag = 'scoped memory for tpu_custom_call.1']
    #allocation7 [shape = 'u8[4096]{0}', space=vmem, size = 0x1000, scoped, tag = 'output window, operand 0, single buffered']
    %7 = vsyncpa [#allocation3], 0
    %8 = vsyncpa [#allocation6], 0
    %9 = vsyncpa [#allocation4], 0
    // Predicated region
    $region2: #{tpu_custom_call.1} parent=1 // pred_check
      _
    $region3: #{tpu_custom_call.1} parent=1 // pred_check_branch
      %11 = sbr.rel (0) target = $region5
    $region4: #{tpu_custom_call.1} parent=1 // pred_region
      %s13 = ssub.s32 128, 128
      %14 = vsyncadd [#allocation3], %s13
      %s16 = sshll.u32 [#allocation2], 4
      %s17 = int_to_ptr.vmem [resolvable:$true] %s16
      %19 = dma.hbm_to_vmem [thread:$0]  %s0, 128, %s17, [#allocation3]
    $region5: #{tpu_custom_call.1} parent=1 // pred_fallthru
      _
    // Predicated region
    $region6: #{tpu_custom_call.1} parent=1 // pred_check
      _
    $region7: #{tpu_custom_call.1} parent=1 // pred_check_branch
      %21 = sbr.rel (0) target = $region9
    $region8: #{tpu_custom_call.1} parent=1 // pred_region
      %s23 = ssub.s32 128, 128
      %24 = vsyncadd [#allocation6], %s23
      %s25 = sshll.u32 [#allocation5], 4
      %s26 = int_to_ptr.vmem [resolvable:$true] %s25
      %31 = dma.hbm_to_vmem [thread:$0]  %s1, 128, %s26, [#allocation6], 64, 64, 4
    $region9: #{tpu_custom_call.1} parent=1 // pred_fallthru
      _
    // Predicated region
    $region10: #{tpu_custom_call.1} parent=1 // pred_check
      _
    $region11: #{tpu_custom_call.1} parent=1 // pred_check_branch
      %33 = sbr.rel (0) target = $region13
    $region12: #{tpu_custom_call.1} parent=1 // pred_region
      %34 = dma.done [#allocation3], 128
    $region13: #{tpu_custom_call.1} parent=1 // pred_fallthru
      _
    // Predicated region
    $region14: #{tpu_custom_call.1} parent=1 // pred_check
      _
    $region15: #{tpu_custom_call.1} parent=1 // pred_check_branch
      %36 = sbr.rel (0) target = $region17
    $region16: #{tpu_custom_call.1} parent=1 // pred_region
      %37 = dma.done [#allocation6], 128
    $region17: #{tpu_custom_call.1} parent=1 // pred_fallthru
      _
    %v39 = vld [vmem:[#allocation2] sm:$0xff]
    %v40 = vpack.c.bf16 %v39, %v39
    %v41 = vunpack.c.l.bf16 %v40
    %v42 = vsub.f32 %v39, %v41
    %v43 = vpack.c.bf16 %v42, %v42
    %v44 = vld [vmem:[#allocation5] sm:$0xf]
    %v45 = vld [vmem:[#allocation5 + $0x4] sm:$0xf]
    %v48 = vunpack.c.l.b16 %v44
    %v49 = vunpack.c.l.b16 %v45
    %v50 = vpack.c.b16 %v49, %v48
    %vm52 = vcmask 130048
    %v54 = vsel %vm52, %v43, 0
    %56 = vmatprep.subr.bf16.mxu0 0
    %57 = vmatpush1.bf16.msra.mxu0 0
    %58 = vmatprep.subr.bf16.mxu0 0
    %59 = vmatpush1.bf16.msra.mxu0 0
    %60 = vmatprep.subr.bf16.mxu0 0
    %61 = vmatpush1.bf16.msra.mxu0 0
    %62 = vmatprep.subr.bf16.mxu0 0
    %63 = vmatpush1.bf16.msra.mxu0 0
    %64 = vmatprep.subr.bf16.mxu0 0
    %65 = vmatpush1.bf16.msra.mxu0 0
    %66 = vmatprep.subr.bf16.mxu0 0
    %67 = vmatpush1.bf16.msra.mxu0 0
    %68 = vmatprep.subr.bf16.mxu0 0
    %69 = vmatpush1.bf16.msra.mxu0 0
    %70 = vmatprep.subr.bf16.mxu0 0
    %71 = vmatpush1.bf16.msra.mxu0 %v50
    %72 = vmatprep.subr.bf16.mxu0 0
    %73 = vmatpush2.bf16.msra.mxu0 0
    %74 = vmatprep.subr.bf16.mxu0 0
    %75 = vmatpush2.bf16.msra.mxu0 0
    %76 = vmatprep.subr.bf16.mxu0 0
    %77 = vmatpush2.bf16.msra.mxu0 0
    %78 = vmatprep.subr.bf16.mxu0 0
    %79 = vmatpush2.bf16.msra.mxu0 0
    %80 = vmatprep.subr.bf16.mxu0 0
    %81 = vmatpush2.bf16.msra.mxu0 0
    %82 = vmatprep.subr.bf16.mxu0 0
    %83 = vmatpush2.bf16.msra.mxu0 0
    %84 = vmatprep.subr.bf16.mxu0 0
    %85 = vmatpush2.bf16.msra.mxu0 0
    %86 = vmatprep.subr.bf16.mxu0 0
    %87 = vmatpush2.bf16.msra.mxu0 0
    %88 = vmatprep.mubr.bf16.mxu0 0
    %89 = vmatmul.mubr.bf16.gmra.mxu0 %v54
    %v90 = vpop.f32.mrf.mxu0
    %v91 = vadd.f32 0.0, %v90
    %v92 = vpop.f32.mrf.mxu0
    %v93 = vpop.f32.mrf.mxu0
    %v94 = vpop.f32.mrf.mxu0
    %95 = vdwg.mxu0
    %v97 = vsel %vm52, %v40, 0
    %99 = vmatprep.subr.bf16.mxu0 0
    %100 = vmatpush1.bf16.msra.mxu0 0
    %101 = vmatprep.subr.bf16.mxu0 0
    %102 = vmatpush1.bf16.msra.mxu0 0
    %103 = vmatprep.subr.bf16.mxu0 0
    %104 = vmatpush1.bf16.msra.mxu0 0
    %105 = vmatprep.subr.bf16.mxu0 0
    %106 = vmatpush1.bf16.msra.mxu0 0
    %107 = vmatprep.subr.bf16.mxu0 0
    %108 = vmatpush1.bf16.msra.mxu0 0
    %109 = vmatprep.subr.bf16.mxu0 0
    %110 = vmatpush1.bf16.msra.mxu0 0
    %111 = vmatprep.subr.bf16.mxu0 0
    %112 = vmatpush1.bf16.msra.mxu0 0
    %113 = vmatprep.subr.bf16.mxu0 0
    %114 = vmatpush1.bf16.msra.mxu0 %v50
    %115 = vmatprep.subr.bf16.mxu0 0
    %116 = vmatpush2.bf16.msra.mxu0 0
    %117 = vmatprep.subr.bf16.mxu0 0
    %118 = vmatpush2.bf16.msra.mxu0 0
    %119 = vmatprep.subr.bf16.mxu0 0
    %120 = vmatpush2.bf16.msra.mxu0 0
    %121 = vmatprep.subr.bf16.mxu0 0
    %122 = vmatpush2.bf16.msra.mxu0 0
    %123 = vmatprep.subr.bf16.mxu0 0
    %124 = vmatpush2.bf16.msra.mxu0 0
    %125 = vmatprep.subr.bf16.mxu0 0
    %126 = vmatpush2.bf16.msra.mxu0 0
    %127 = vmatprep.subr.bf16.mxu0 0
    %128 = vmatpush2.bf16.msra.mxu0 0
    %129 = vmatprep.subr.bf16.mxu0 0
    %130 = vmatpush2.bf16.msra.mxu0 0
    %131 = vmatprep.mubr.bf16.mxu0 0
    %132 = vmatmul.mubr.bf16.gmra.mxu0 %v97
    %v133 = vpop.f32.mrf.mxu0
    %v134 = vadd.f32 %v91, %v133
    %v135 = vpop.f32.mrf.mxu0
    %v136 = vpop.f32.mrf.mxu0
    %v137 = vpop.f32.mrf.mxu0
    %138 = vdwg.mxu0
    %v139 = vmul.f32 %v134, 0.2
    %140 = vst.msk [vmem:[#allocation7] sm:$0xff] %vm52, %v139
    // Predicated region
    $region18: #{tpu_custom_call.1} parent=1 // pred_check
      _
    $region19: #{tpu_custom_call.1} parent=1 // pred_check_branch
      %142 = sbr.rel (0) target = $region21
    $region20: #{tpu_custom_call.1} parent=1 // pred_region
      %s144 = ssub.s32 128, 128
      %145 = vsyncadd [#allocation4], %s144
      %s147 = sshll.u32 [#allocation7], 4
      %s148 = int_to_ptr.vmem [resolvable:$true] %s147
      %150 = dma.vmem_to_hbm [thread:$0]  %s148, 128, %s2, [#allocation4]
    $region21: #{tpu_custom_call.1} parent=1 // pred_fallthru
      _
    // Predicated region
    $region22: #{tpu_custom_call.1} parent=1 // pred_check
      _
    $region23: #{tpu_custom_call.1} parent=1 // pred_check_branch
      %152 = sbr.rel (0) target = $region25
    $region24: #{tpu_custom_call.1} parent=1 // pred_region
      %153 = dma.done [#allocation4], 128
    $region25: #{tpu_custom_call.1} parent=1 // pred_fallthru
      _
    %154 = vsyncpa [#allocation3], 1
    %155 = vsyncpa [#allocation6], 1
    %156 = vsyncpa [#allocation4], 1

</llo_original>
